<compile_context>
chip_gen: v6e
topology: v6e:2x2x1
jax: 0.10.0
libtpu: 0.0.40
codegen_flags: <defaults>
</compile_context>

<pallas_src>
import functools

import jax
import jax.numpy as jnp
from jax.experimental import pallas as pl
from jax.experimental.pallas import tpu as pltpu

PRIMITIVES = [
    'none', 'max_pool_3x3', 'avg_pool_3x3', 'skip_connect',
    'sep_conv_3x3', 'sep_conv_5x5', 'dil_conv_3x3', 'dil_conv_5x5',
]


# ----------------------------------------------------------------------------
# Pallas kernel: full SepConv (3x3, stride 1) for one packed group of images
# per grid step, in (rows = image*C + channel, H*W) layout: channels/images on
# sublanes, flattened space on lanes.
# ----------------------------------------------------------------------------
def _sep_conv3x3_kernel(x_ref, dw_ref, pw_ref, bn_ref, mask_ref, o_ref, *, W):
    X = x_ref.shape[-1]          # flattened H*W on the lane axis

    def depthwise3x3(x, col_off):
        # x: (ROWS, X). Each tap is a lane-roll of the resident tile (XLU),
        # masked at the image border (precomputed host-side masks), scaled by
        # the per-row (per-channel) tap weight.
        acc = None
        for dh in (-1, 0, 1):
            for dwn in (-1, 0, 1):
                k = (dh + 1) * 3 + (dwn + 1)          # tap index 0..8
                s = dh * W + dwn                       # flattened source offset
                v = x if s == 0 else pltpu.roll(x, shift=(-s) % X, axis=1)
                if s != 0:                             # zero-padding border mask
                    v = v * mask_ref[k:k + 1, :]       # (1, X) broadcast
                tap = dw_ref[:, col_off + k:col_off + k + 1]   # (ROWS, 1)
                term = v * tap
                acc = term if acc is None else acc + term
        return acc

    # ---- block 1: ReLU -> depthwise 3x3 -> pointwise(+BN scale) -> shift ----
    xr = jnp.maximum(x_ref[...], 0.0)                              # (ROWS, X)
    a1 = depthwise3x3(xr, 0)
    y1 = jnp.dot(pw_ref[0], a1, preferred_element_type=jnp.float32)
    y1 = y1 + bn_ref[:, 0:1]                                       # BN shift

    # ---- block 2: ReLU -> depthwise 3x3 -> pointwise(+BN scale) -> shift ----
    y1 = jnp.maximum(y1, 0.0)
    a2 = depthwise3x3(y1, 9)
    y2 = jnp.dot(pw_ref[1], a2, preferred_element_type=jnp.float32)
    o_ref[...] = y2 + bn_ref[:, 1:2]


def sep_conv3x3_pallas(x_nchw, p):
    """x_nchw: (N, C, H, W) float32 -> (N, C, H, W) float32."""
    N, C, H, W = x_nchw.shape
    X = H * W
    G = max(1, 8 // C)            # images packed per grid step (fill 8 sublanes)
    assert N % G == 0, "batch must be divisible by the packing factor"
    ROWS = G * C                  # sublane rows per step (8 when C <= 8)
    steps = (N * C) // ROWS       # grid steps; stays >1 for larger N (v7x TCs)

    # x: NCHW -> (N*C, H*W). Row r = image*C + channel. Free reshape.
    x2d = x_nchw.reshape(N * C, X).astype(jnp.float32)

    # Depthwise taps: (3,3,C) -> (C,9) (channels on sublanes, taps on lanes),
    # tiled over the packed images, both blocks concatenated -> (ROWS, 18).
    dw1 = jnp.tile(p['dw1'].reshape(9, C).T, (G, 1))
    dw2 = jnp.tile(p['dw2'].reshape(9, C).T, (G, 1))
    dw_all = jnp.concatenate([dw1, dw2], axis=1).astype(jnp.float32)

    # Pointwise with BN scale folded in, replicated block-diagonally over the
    # packed images so images never mix: (2, ROWS, ROWS).
    eye_g = jnp.eye(G, dtype=jnp.float32)
    pw1 = jnp.kron(eye_g, p['bn1_scale'] * p['pw1'])
    pw2 = jnp.kron(eye_g, p['bn2_scale'] * p['pw2'])
    pw_all = jnp.stack([pw1, pw2]).astype(jnp.float32)

    # BN shifts packed into one (ROWS, 2) input.
    bn_shift = jnp.concatenate(
        [jnp.tile(p['bn1_shift'], (G, 1)), jnp.tile(p['bn2_shift'], (G, 1))],
        axis=1).astype(jnp.float32)

    # Precomputed zero-padding border masks, one (X,) row per tap (center=1).
    pos = jnp.arange(X, dtype=jnp.int32)
    row, col = pos // W, pos % W
    mask_rows = []
    for dh in (-1, 0, 1):
        for dwn in (-1, 0, 1):
            m = jnp.ones((X,), jnp.float32)
            if dh == -1:
                m = m * (row >= 1)
            if dh == 1:
                m = m * (row <= H - 2)
            if dwn == -1:
                m = m * (col >= 1)
            if dwn == 1:
                m = m * (col <= W - 2)
            mask_rows.append(m)
    masks = jnp.stack(mask_rows).astype(jnp.float32)          # (9, X)

    kernel = functools.partial(_sep_conv3x3_kernel, W=W)
    out = pl.pallas_call(
        kernel,
        out_shape=jax.ShapeDtypeStruct((N * C, X), jnp.float32),
        grid=(steps,),
        in_specs=[
            pl.BlockSpec((ROWS, X), lambda b: (b, 0)),          # packed x
            pl.BlockSpec((ROWS, 18), lambda b: (0, 0)),         # dw taps 1&2
            pl.BlockSpec((2, ROWS, ROWS), lambda b: (0, 0, 0)),  # pw 1&2 (BN folded)
            pl.BlockSpec((ROWS, 2), lambda b: (0, 0)),          # BN shifts 1&2
            pl.BlockSpec((9, X), lambda b: (0, 0)),             # border masks
        ],
        out_specs=pl.BlockSpec((ROWS, X), lambda b: (b, 0)),
        compiler_params=pltpu.CompilerParams(
            dimension_semantics=("parallel",)),                 # megacore on v7x
    )(x2d, dw_all, pw_all, bn_shift, masks)
    return out.reshape(N, C, H, W)


# ----------------------------------------------------------------------------
# Parameter init (deterministic, synthetic). Conventions:
#   depthwise weight: (3, 3, C)        (PyTorch (C,1,3,3) permuted)
#   pointwise weight: (C_out, C_in)    (PyTorch (C_out,C_in,1,1) squeezed)
#   BN folded to scale/shift of shape (C, 1) using fresh running stats.
# ----------------------------------------------------------------------------
def init_sep_conv_params(key, C):
    k1, k2, k3, k4 = jax.random.split(key, 4)
    eps = 1e-5
    bn_scale = jnp.full((C, 1), 1.0 / jnp.sqrt(1.0 + eps), jnp.float32)
    bn_shift = jnp.zeros((C, 1), jnp.float32)
    return {
        'dw1': 0.1 * jax.random.normal(k1, (3, 3, C), jnp.float32),
        'pw1': 0.1 * jax.random.normal(k2, (C, C), jnp.float32),
        'bn1_scale': bn_scale, 'bn1_shift': bn_shift,
        'dw2': 0.1 * jax.random.normal(k3, (3, 3, C), jnp.float32),
        'pw2': 0.1 * jax.random.normal(k4, (C, C), jnp.float32),
        'bn2_scale': bn_scale, 'bn2_shift': bn_shift,
    }


class MixedOp:
    """JAX/Pallas port of the meta-model MixedOp: holds exactly one op."""

    def __init__(self, primitive, C, stride, key):
        assert primitive == 'sep_conv_3x3' and stride == 1, \
            "this synthetic port instantiates the sep_conv_3x3 / stride=1 branch"
        self.index = PRIMITIVES.index(primitive)
        self.params = init_sep_conv_params(key, C)

    def forward(self, x, num_step, params=None, training=False,
                backup_running_statistics=False):
        # TODO(synk): per-step BN running statistics / training-mode batch
        # stats / backup-restore are not modeled; eval-mode BN is folded into
        # the pointwise weights (scale) and a per-channel shift in-kernel.
        p = self.params if params is None else params
        return sep_conv3x3_pallas(x, p)

    def restore_backup_stats(self):
        pass  # no live running statistics in this synthetic port


# ----------------------------------------------------------------------------
# Pure-JAX reference (same math, NCHW, unfolded params) for verification.
# ----------------------------------------------------------------------------
def ref_forward(x_nchw, p):
    x = x_nchw.astype(jnp.float32)
    N, C, H, W = x.shape

    def block(inp, dw, pw, s, b):
        r = jnp.maximum(inp, 0.0)
        rp = jnp.pad(r, ((0, 0), (0, 0), (1, 1), (1, 1)))
        acc = jnp.zeros_like(inp)
        for dh in range(3):
            for dwi in range(3):
                acc = acc + rp[:, :, dh:dh + H, dwi:dwi + W] \
                    * dw[dh, dwi].reshape(1, C, 1, 1)
        y = jnp.einsum('nchw,dc->ndhw', acc, pw)
        return y * s.reshape(1, C, 1, 1) + b.reshape(1, C, 1, 1)

    y1 = block(x, p['dw1'], p['pw1'], p['bn1_scale'], p['bn1_shift'])
    y2 = block(y1, p['dw2'], p['pw2'], p['bn2_scale'], p['bn2_shift'])
    return y2


if __name__ == "__main__":
    key = jax.random.PRNGKey(0)
    kx, kp = jax.random.split(key)
    N, C, H, W = 2, 4, 16, 16
    x = jax.random.normal(kx, (N, C, H, W), jnp.float32)

    op = MixedOp('sep_conv_3x3', C=C, stride=1, key=kp)
    out = op.forward(x, num_step=0, params=None, training=False,
                     backup_running_statistics=False)
    out = jax.block_until_ready(out)

    ref = ref_forward(x, op.params)
    assert out.shape == (N, C, H, W)
    assert jnp.allclose(out, ref, atol=1e-4, rtol=1e-4), \
        float(jnp.max(jnp.abs(out - ref)))
    print("KERNEL_OK")
</pallas_src>

<mosaic_0001>
module attributes {stable_mosaic.version = 11 : i64} {
  func.func @_sep_conv3x3_kernel(%arg0: i32, %arg1: memref<8x256xf32, #tpu.memory_space<vmem>>, %arg2: memref<8x18xf32, #tpu.memory_space<vmem>>, %arg3: memref<2x8x8xf32, #tpu.memory_space<vmem>>, %arg4: memref<8x2xf32, #tpu.memory_space<vmem>>, %arg5: memref<9x256xf32, #tpu.memory_space<vmem>>, %arg6: memref<8x256xf32, #tpu.memory_space<vmem>>) attributes {dimension_semantics = [#tpu.dimension_semantics<parallel>], iteration_bounds = array<i64: 1>, scalar_prefetch = 0 : i64, scratch_operands = 0 : i64, tpu.core_type = #tpu.core_type<tc>, window_params = [{transform_indices = @transform_0, window_bounds = array<i64: 8, 256>}, {pipeline_mode = #tpu.pipeline_mode<synchronous>, transform_indices = @transform_1, window_bounds = array<i64: 8, 18>}, {pipeline_mode = #tpu.pipeline_mode<synchronous>, transform_indices = @transform_2, window_bounds = array<i64: 2, 8, 8>}, {pipeline_mode = #tpu.pipeline_mode<synchronous>, transform_indices = @transform_3, window_bounds = array<i64: 8, 2>}, {pipeline_mode = #tpu.pipeline_mode<synchronous>, transform_indices = @transform_4, window_bounds = array<i64: 9, 256>}, {transform_indices = @transform_5, window_bounds = array<i64: 8, 256>}]} {
    %c0 = arith.constant 0 : index
    %c0_0 = arith.constant 0 : index
    %0 = vector.load %arg1[%c0, %c0_0] : memref<8x256xf32, #tpu.memory_space<vmem>>, vector<8x256xf32>
    %cst = arith.constant 0.000000e+00 : f32
    %1 = vector.broadcast %cst : f32 to vector<8x256xf32>
    %2 = arith.maximumf %0, %1 : vector<8x256xf32>
    %c17_i32 = arith.constant 17 : i32
    %3 = tpu.dynamic_rotate %2 by %c17_i32 dim 1 : vector<8x256xf32>, i32 -> vector<8x256xf32>
    %c0_1 = arith.constant 0 : index
    %c0_2 = arith.constant 0 : index
    %4 = vector.load %arg5[%c0_1, %c0_2] : memref<9x256xf32, #tpu.memory_space<vmem>>, vector<1x256xf32>
    %5 = vector.broadcast %4 : vector<1x256xf32> to vector<8x256xf32>
    %6 = arith.mulf %3, %5 : vector<8x256xf32>
    %c0_3 = arith.constant 0 : index
    %c0_4 = arith.constant 0 : index
    %7 = vector.load %arg2[%c0_3, %c0_4] : memref<8x18xf32, #tpu.memory_space<vmem>>, vector<8x1xf32>
    %8 = vector.broadcast %7 : vector<8x1xf32> to vector<8x256xf32>
    %9 = arith.mulf %6, %8 : vector<8x256xf32>
    %c16_i32 = arith.constant 16 : i32
    %10 = tpu.dynamic_rotate %2 by %c16_i32 dim 1 : vector<8x256xf32>, i32 -> vector<8x256xf32>
    %c1 = arith.constant 1 : index
    %c0_5 = arith.constant 0 : index
    %11 = vector.load %arg5[%c1, %c0_5] : memref<9x256xf32, #tpu.memory_space<vmem>>, vector<1x256xf32>
    %12 = vector.broadcast %11 : vector<1x256xf32> to vector<8x256xf32>
    %13 = arith.mulf %10, %12 : vector<8x256xf32>
    %c0_6 = arith.constant 0 : index
    %c1_7 = arith.constant 1 : index
    %14 = vector.load %arg2[%c0_6, %c1_7] : memref<8x18xf32, #tpu.memory_space<vmem>>, vector<8x1xf32>
    %15 = vector.broadcast %14 : vector<8x1xf32> to vector<8x256xf32>
    %16 = arith.mulf %13, %15 : vector<8x256xf32>
    %17 = arith.addf %9, %16 : vector<8x256xf32>
    %c15_i32 = arith.constant 15 : i32
    %18 = tpu.dynamic_rotate %2 by %c15_i32 dim 1 : vector<8x256xf32>, i32 -> vector<8x256xf32>
    %c2 = arith.constant 2 : index
    %c0_8 = arith.constant 0 : index
    %19 = vector.load %arg5[%c2, %c0_8] : memref<9x256xf32, #tpu.memory_space<vmem>>, vector<1x256xf32>
    %20 = vector.broadcast %19 : vector<1x256xf32> to vector<8x256xf32>
    %21 = arith.mulf %18, %20 : vector<8x256xf32>
    %c0_9 = arith.constant 0 : index
    %c2_10 = arith.constant 2 : index
    %22 = vector.load %arg2[%c0_9, %c2_10] : memref<8x18xf32, #tpu.memory_space<vmem>>, vector<8x1xf32>
    %23 = vector.broadcast %22 : vector<8x1xf32> to vector<8x256xf32>
    %24 = arith.mulf %21, %23 : vector<8x256xf32>
    %25 = arith.addf %17, %24 : vector<8x256xf32>
    %c1_i32 = arith.constant 1 : i32
    %26 = tpu.dynamic_rotate %2 by %c1_i32 dim 1 : vector<8x256xf32>, i32 -> vector<8x256xf32>
    %c3 = arith.constant 3 : index
    %c0_11 = arith.constant 0 : index
    %27 = vector.load %arg5[%c3, %c0_11] : memref<9x256xf32, #tpu.memory_space<vmem>>, vector<1x256xf32>
    %28 = vector.broadcast %27 : vector<1x256xf32> to vector<8x256xf32>
    %29 = arith.mulf %26, %28 : vector<8x256xf32>
    %c0_12 = arith.constant 0 : index
    %c3_13 = arith.constant 3 : index
    %30 = vector.load %arg2[%c0_12, %c3_13] : memref<8x18xf32, #tpu.memory_space<vmem>>, vector<8x1xf32>
    %31 = vector.broadcast %30 : vector<8x1xf32> to vector<8x256xf32>
    %32 = arith.mulf %29, %31 : vector<8x256xf32>
    %33 = arith.addf %25, %32 : vector<8x256xf32>
    %c0_14 = arith.constant 0 : index
    %c4 = arith.constant 4 : index
    %34 = vector.load %arg2[%c0_14, %c4] : memref<8x18xf32, #tpu.memory_space<vmem>>, vector<8x1xf32>
    %35 = vector.broadcast %34 : vector<8x1xf32> to vector<8x256xf32>
    %36 = arith.mulf %2, %35 : vector<8x256xf32>
    %37 = arith.addf %33, %36 : vector<8x256xf32>
    %c255_i32 = arith.constant 255 : i32
    %38 = tpu.dynamic_rotate %2 by %c255_i32 dim 1 : vector<8x256xf32>, i32 -> vector<8x256xf32>
    %c5 = arith.constant 5 : index
    %c0_15 = arith.constant 0 : index
    %39 = vector.load %arg5[%c5, %c0_15] : memref<9x256xf32, #tpu.memory_space<vmem>>, vector<1x256xf32>
    %40 = vector.broadcast %39 : vector<1x256xf32> to vector<8x256xf32>
    %41 = arith.mulf %38, %40 : vector<8x256xf32>
    %c0_16 = arith.constant 0 : index
    %c5_17 = arith.constant 5 : index
    %42 = vector.load %arg2[%c0_16, %c5_17] : memref<8x18xf32, #tpu.memory_space<vmem>>, vector<8x1xf32>
    %43 = vector.broadcast %42 : vector<8x1xf32> to vector<8x256xf32>
    %44 = arith.mulf %41, %43 : vector<8x256xf32>
    %45 = arith.addf %37, %44 : vector<8x256xf32>
    %c241_i32 = arith.constant 241 : i32
    %46 = tpu.dynamic_rotate %2 by %c241_i32 dim 1 : vector<8x256xf32>, i32 -> vector<8x256xf32>
    %c6 = arith.constant 6 : index
    %c0_18 = arith.constant 0 : index
    %47 = vector.load %arg5[%c6, %c0_18] : memref<9x256xf32, #tpu.memory_space<vmem>>, vector<1x256xf32>
    %48 = vector.broadcast %47 : vector<1x256xf32> to vector<8x256xf32>
    %49 = arith.mulf %46, %48 : vector<8x256xf32>
    %c0_19 = arith.constant 0 : index
    %c6_20 = arith.constant 6 : index
    %50 = vector.load %arg2[%c0_19, %c6_20] : memref<8x18xf32, #tpu.memory_space<vmem>>, vector<8x1xf32>
    %51 = vector.broadcast %50 : vector<8x1xf32> to vector<8x256xf32>
    %52 = arith.mulf %49, %51 : vector<8x256xf32>
    %53 = arith.addf %45, %52 : vector<8x256xf32>
    %c240_i32 = arith.constant 240 : i32
    %54 = tpu.dynamic_rotate %2 by %c240_i32 dim 1 : vector<8x256xf32>, i32 -> vector<8x256xf32>
    %c7 = arith.constant 7 : index
    %c0_21 = arith.constant 0 : index
    %55 = vector.load %arg5[%c7, %c0_21] : memref<9x256xf32, #tpu.memory_space<vmem>>, vector<1x256xf32>
    %56 = vector.broadcast %55 : vector<1x256xf32> to vector<8x256xf32>
    %57 = arith.mulf %54, %56 : vector<8x256xf32>
    %c0_22 = arith.constant 0 : index
    %c7_23 = arith.constant 7 : index
    %58 = vector.load %arg2[%c0_22, %c7_23] : memref<8x18xf32, #tpu.memory_space<vmem>>, vector<8x1xf32>
    %59 = vector.broadcast %58 : vector<8x1xf32> to vector<8x256xf32>
    %60 = arith.mulf %57, %59 : vector<8x256xf32>
    %61 = arith.addf %53, %60 : vector<8x256xf32>
    %c239_i32 = arith.constant 239 : i32
    %62 = tpu.dynamic_rotate %2 by %c239_i32 dim 1 : vector<8x256xf32>, i32 -> vector<8x256xf32>
    %c8 = arith.constant 8 : index
    %c0_24 = arith.constant 0 : index
    %63 = vector.load %arg5[%c8, %c0_24] : memref<9x256xf32, #tpu.memory_space<vmem>>, vector<1x256xf32>
    %64 = vector.broadcast %63 : vector<1x256xf32> to vector<8x256xf32>
    %65 = arith.mulf %62, %64 : vector<8x256xf32>
    %c0_25 = arith.constant 0 : index
    %c8_26 = arith.constant 8 : index
    %66 = vector.load %arg2[%c0_25, %c8_26] : memref<8x18xf32, #tpu.memory_space<vmem>>, vector<8x1xf32>
    %67 = vector.broadcast %66 : vector<8x1xf32> to vector<8x256xf32>
    %68 = arith.mulf %65, %67 : vector<8x256xf32>
    %69 = arith.addf %61, %68 : vector<8x256xf32>
    %c0_27 = arith.constant 0 : index
    %c0_28 = arith.constant 0 : index
    %c0_29 = arith.constant 0 : index
    %70 = vector.load %arg3[%c0_27, %c0_28, %c0_29] : memref<2x8x8xf32, #tpu.memory_space<vmem>>, vector<1x8x8xf32>
    %71 = vector.shape_cast %70 : vector<1x8x8xf32> to vector<8x8xf32>
    %cst_30 = arith.constant dense<0.000000e+00> : vector<8x256xf32>
    %72 = tpu.matmul %71, %69, %cst_30 {dimension_numbers = #tpu.dot_dimension_numbers<[1], [0], [0], [1], [0, 0, 1, 1], [], []>} : vector<8x8xf32>, vector<8x256xf32>, vector<8x256xf32> -> vector<8x256xf32>
    %c0_31 = arith.constant 0 : index
    %c0_32 = arith.constant 0 : index
    %73 = vector.load %arg4[%c0_31, %c0_32] : memref<8x2xf32, #tpu.memory_space<vmem>>, vector<8x1xf32>
    %74 = vector.broadcast %73 : vector<8x1xf32> to vector<8x256xf32>
    %75 = arith.addf %72, %74 : vector<8x256xf32>
    %cst_33 = arith.constant 0.000000e+00 : f32
    %76 = vector.broadcast %cst_33 : f32 to vector<8x256xf32>
    %77 = arith.maximumf %75, %76 : vector<8x256xf32>
    %c17_i32_34 = arith.constant 17 : i32
    %78 = tpu.dynamic_rotate %77 by %c17_i32_34 dim 1 : vector<8x256xf32>, i32 -> vector<8x256xf32>
    %c0_35 = arith.constant 0 : index
    %c0_36 = arith.constant 0 : index
    %79 = vector.load %arg5[%c0_35, %c0_36] : memref<9x256xf32, #tpu.memory_space<vmem>>, vector<1x256xf32>
    %80 = vector.broadcast %79 : vector<1x256xf32> to vector<8x256xf32>
    %81 = arith.mulf %78, %80 : vector<8x256xf32>
    %c0_37 = arith.constant 0 : index
    %c9 = arith.constant 9 : index
    %82 = vector.load %arg2[%c0_37, %c9] : memref<8x18xf32, #tpu.memory_space<vmem>>, vector<8x1xf32>
    %83 = vector.broadcast %82 : vector<8x1xf32> to vector<8x256xf32>
    %84 = arith.mulf %81, %83 : vector<8x256xf32>
    %c16_i32_38 = arith.constant 16 : i32
    %85 = tpu.dynamic_rotate %77 by %c16_i32_38 dim 1 : vector<8x256xf32>, i32 -> vector<8x256xf32>
    %c1_39 = arith.constant 1 : index
    %c0_40 = arith.constant 0 : index
    %86 = vector.load %arg5[%c1_39, %c0_40] : memref<9x256xf32, #tpu.memory_space<vmem>>, vector<1x256xf32>
    %87 = vector.broadcast %86 : vector<1x256xf32> to vector<8x256xf32>
    %88 = arith.mulf %85, %87 : vector<8x256xf32>
    %c0_41 = arith.constant 0 : index
    %c10 = arith.constant 10 : index
    %89 = vector.load %arg2[%c0_41, %c10] : memref<8x18xf32, #tpu.memory_space<vmem>>, vector<8x1xf32>
    %90 = vector.broadcast %89 : vector<8x1xf32> to vector<8x256xf32>
    %91 = arith.mulf %88, %90 : vector<8x256xf32>
    %92 = arith.addf %84, %91 : vector<8x256xf32>
    %c15_i32_42 = arith.constant 15 : i32
    %93 = tpu.dynamic_rotate %77 by %c15_i32_42 dim 1 : vector<8x256xf32>, i32 -> vector<8x256xf32>
    %c2_43 = arith.constant 2 : index
    %c0_44 = arith.constant 0 : index
    %94 = vector.load %arg5[%c2_43, %c0_44] : memref<9x256xf32, #tpu.memory_space<vmem>>, vector<1x256xf32>
    %95 = vector.broadcast %94 : vector<1x256xf32> to vector<8x256xf32>
    %96 = arith.mulf %93, %95 : vector<8x256xf32>
    %c0_45 = arith.constant 0 : index
    %c11 = arith.constant 11 : index
    %97 = vector.load %arg2[%c0_45, %c11] : memref<8x18xf32, #tpu.memory_space<vmem>>, vector<8x1xf32>
    %98 = vector.broadcast %97 : vector<8x1xf32> to vector<8x256xf32>
    %99 = arith.mulf %96, %98 : vector<8x256xf32>
    %100 = arith.addf %92, %99 : vector<8x256xf32>
    %c1_i32_46 = arith.constant 1 : i32
    %101 = tpu.dynamic_rotate %77 by %c1_i32_46 dim 1 : vector<8x256xf32>, i32 -> vector<8x256xf32>
    %c3_47 = arith.constant 3 : index
    %c0_48 = arith.constant 0 : index
    %102 = vector.load %arg5[%c3_47, %c0_48] : memref<9x256xf32, #tpu.memory_space<vmem>>, vector<1x256xf32>
    %103 = vector.broadcast %102 : vector<1x256xf32> to vector<8x256xf32>
    %104 = arith.mulf %101, %103 : vector<8x256xf32>
    %c0_49 = arith.constant 0 : index
    %c12 = arith.constant 12 : index
    %105 = vector.load %arg2[%c0_49, %c12] : memref<8x18xf32, #tpu.memory_space<vmem>>, vector<8x1xf32>
    %106 = vector.broadcast %105 : vector<8x1xf32> to vector<8x256xf32>
    %107 = arith.mulf %104, %106 : vector<8x256xf32>
    %108 = arith.addf %100, %107 : vector<8x256xf32>
    %c0_50 = arith.constant 0 : index
    %c13 = arith.constant 13 : index
    %109 = vector.load %arg2[%c0_50, %c13] : memref<8x18xf32, #tpu.memory_space<vmem>>, vector<8x1xf32>
    %110 = vector.broadcast %109 : vector<8x1xf32> to vector<8x256xf32>
    %111 = arith.mulf %77, %110 : vector<8x256xf32>
    %112 = arith.addf %108, %111 : vector<8x256xf32>
    %c255_i32_51 = arith.constant 255 : i32
    %113 = tpu.dynamic_rotate %77 by %c255_i32_51 dim 1 : vector<8x256xf32>, i32 -> vector<8x256xf32>
    %c5_52 = arith.constant 5 : index
    %c0_53 = arith.constant 0 : index
    %114 = vector.load %arg5[%c5_52, %c0_53] : memref<9x256xf32, #tpu.memory_space<vmem>>, vector<1x256xf32>
    %115 = vector.broadcast %114 : vector<1x256xf32> to vector<8x256xf32>
    %116 = arith.mulf %113, %115 : vector<8x256xf32>
    %c0_54 = arith.constant 0 : index
    %c14 = arith.constant 14 : index
    %117 = vector.load %arg2[%c0_54, %c14] : memref<8x18xf32, #tpu.memory_space<vmem>>, vector<8x1xf32>
    %118 = vector.broadcast %117 : vector<8x1xf32> to vector<8x256xf32>
    %119 = arith.mulf %116, %118 : vector<8x256xf32>
    %120 = arith.addf %112, %119 : vector<8x256xf32>
    %c241_i32_55 = arith.constant 241 : i32
    %121 = tpu.dynamic_rotate %77 by %c241_i32_55 dim 1 : vector<8x256xf32>, i32 -> vector<8x256xf32>
    %c6_56 = arith.constant 6 : index
    %c0_57 = arith.constant 0 : index
    %122 = vector.load %arg5[%c6_56, %c0_57] : memref<9x256xf32, #tpu.memory_space<vmem>>, vector<1x256xf32>
    %123 = vector.broadcast %122 : vector<1x256xf32> to vector<8x256xf32>
    %124 = arith.mulf %121, %123 : vector<8x256xf32>
    %c0_58 = arith.constant 0 : index
    %c15 = arith.constant 15 : index
    %125 = vector.load %arg2[%c0_58, %c15] : memref<8x18xf32, #tpu.memory_space<vmem>>, vector<8x1xf32>
    %126 = vector.broadcast %125 : vector<8x1xf32> to vector<8x256xf32>
    %127 = arith.mulf %124, %126 : vector<8x256xf32>
    %128 = arith.addf %120, %127 : vector<8x256xf32>
    %c240_i32_59 = arith.constant 240 : i32
    %129 = tpu.dynamic_rotate %77 by %c240_i32_59 dim 1 : vector<8x256xf32>, i32 -> vector<8x256xf32>
    %c7_60 = arith.constant 7 : index
    %c0_61 = arith.constant 0 : index
    %130 = vector.load %arg5[%c7_60, %c0_61] : memref<9x256xf32, #tpu.memory_space<vmem>>, vector<1x256xf32>
    %131 = vector.broadcast %130 : vector<1x256xf32> to vector<8x256xf32>
    %132 = arith.mulf %129, %131 : vector<8x256xf32>
    %c0_62 = arith.constant 0 : index
    %c16 = arith.constant 16 : index
    %133 = vector.load %arg2[%c0_62, %c16] : memref<8x18xf32, #tpu.memory_space<vmem>>, vector<8x1xf32>
    %134 = vector.broadcast %133 : vector<8x1xf32> to vector<8x256xf32>
    %135 = arith.mulf %132, %134 : vector<8x256xf32>
    %136 = arith.addf %128, %135 : vector<8x256xf32>
    %c239_i32_63 = arith.constant 239 : i32
    %137 = tpu.dynamic_rotate %77 by %c239_i32_63 dim 1 : vector<8x256xf32>, i32 -> vector<8x256xf32>
    %c8_64 = arith.constant 8 : index
    %c0_65 = arith.constant 0 : index
    %138 = vector.load %arg5[%c8_64, %c0_65] : memref<9x256xf32, #tpu.memory_space<vmem>>, vector<1x256xf32>
    %139 = vector.broadcast %138 : vector<1x256xf32> to vector<8x256xf32>
    %140 = arith.mulf %137, %139 : vector<8x256xf32>
    %c0_66 = arith.constant 0 : index
    %c17 = arith.constant 17 : index
    %141 = vector.load %arg2[%c0_66, %c17] : memref<8x18xf32, #tpu.memory_space<vmem>>, vector<8x1xf32>
    %142 = vector.broadcast %141 : vector<8x1xf32> to vector<8x256xf32>
    %143 = arith.mulf %140, %142 : vector<8x256xf32>
    %144 = arith.addf %136, %143 : vector<8x256xf32>
    %c1_67 = arith.constant 1 : index
    %c0_68 = arith.constant 0 : index
    %c0_69 = arith.constant 0 : index
    %145 = vector.load %arg3[%c1_67, %c0_68, %c0_69] : memref<2x8x8xf32, #tpu.memory_space<vmem>>, vector<1x8x8xf32>
    %146 = vector.shape_cast %145 : vector<1x8x8xf32> to vector<8x8xf32>
    %cst_70 = arith.constant dense<0.000000e+00> : vector<8x256xf32>
    %147 = tpu.matmul %146, %144, %cst_70 {dimension_numbers = #tpu.dot_dimension_numbers<[1], [0], [0], [1], [0, 0, 1, 1], [], []>} : vector<8x8xf32>, vector<8x256xf32>, vector<8x256xf32> -> vector<8x256xf32>
    %c0_71 = arith.constant 0 : index
    %c1_72 = arith.constant 1 : index
    %148 = vector.load %arg4[%c0_71, %c1_72] : memref<8x2xf32, #tpu.memory_space<vmem>>, vector<8x1xf32>
    %149 = vector.broadcast %148 : vector<8x1xf32> to vector<8x256xf32>
    %150 = arith.addf %147, %149 : vector<8x256xf32>
    %c0_73 = arith.constant 0 : index
    %c0_74 = arith.constant 0 : index
    %151 = vector.load %arg6[%c0_73, %c0_74] : memref<8x256xf32, #tpu.memory_space<vmem>>, vector<8x256xf32>
    tpu.vector_store %arg6[%c0_73, %c0_74], %150 {strides = array<i32>} : memref<8x256xf32, #tpu.memory_space<vmem>>, vector<8x256xf32>,
    return
  }
  func.func @transform_0(%arg0: i32) -> (i32, i32) {
    %c0_i32 = arith.constant 0 : i32
    %c0_i32_0 = arith.constant 0 : i32
    return %arg0, %c0_i32 : i32, i32
  }
  func.func @transform_1(%arg0: i32) -> (i32, i32) {
    %c0_i32 = arith.constant 0 : i32
    %c0_i32_0 = arith.constant 0 : i32
    %c0_i32_1 = arith.constant 0 : i32
    return %c0_i32, %c0_i32_0 : i32, i32
  }
  func.func @transform_2(%arg0: i32) -> (i32, i32, i32) {
    %c0_i32 = arith.constant 0 : i32
    %c0_i32_0 = arith.constant 0 : i32
    %c0_i32_1 = arith.constant 0 : i32
    %c0_i32_2 = arith.constant 0 : i32
    return %c0_i32, %c0_i32_0, %c0_i32_1 : i32, i32, i32
  }
  func.func @transform_3(%arg0: i32) -> (i32, i32) {
    %c0_i32 = arith.constant 0 : i32
    %c0_i32_0 = arith.constant 0 : i32
    %c0_i32_1 = arith.constant 0 : i32
    return %c0_i32, %c0_i32_0 : i32, i32
  }
  func.func @transform_4(%arg0: i32) -> (i32, i32) {
    %c0_i32 = arith.constant 0 : i32
    %c0_i32_0 = arith.constant 0 : i32
    %c0_i32_1 = arith.constant 0 : i32
    return %c0_i32, %c0_i32_0 : i32, i32
  }
  func.func @transform_5(%arg0: i32) -> (i32, i32) {
    %c0_i32 = arith.constant 0 : i32
    %c0_i32_0 = arith.constant 0 : i32
    return %arg0, %c0_i32 : i32, i32
  }
}

</mosaic_0001>

<llo_original>
// kernel: tpu_custom_call.1
$region0: #{tpu_custom_call.1}
  #allocation0 [shape = 'u32[]', space=smem, size = 0x4, offset = 0x4, fixed_abs, tag = 'smem constant byte address 0x4 - core index']
  #allocation1 [shape = 'u32[144,128]{1,0:T(1,128)}', space=vmem, size = 0x12000, scoped, tag = 'internal scratch']
  %s0 = inlined_call_operand.hbm [shape: f32[8,256], index: 0, kind: input, shape index: {}]
  %s1 = inlined_call_operand.vmem [shape: f32[8,18], index: 1, kind: input, shape index: {}]
  %s2 = inlined_call_operand.hbm [shape: f32[2,8,8], index: 2, kind: input, shape index: {}]
  %s3 = inlined_call_operand.vmem [shape: f32[8,2], index: 3, kind: input, shape index: {}]
  %s4 = inlined_call_operand.hbm [shape: f32[9,256], index: 4, kind: input, shape index: {}]
  %s5 = inlined_call_operand.hbm [shape: f32[8,256], index: 5, kind: output, shape index: {}]
  %s6 = sld [smem:[#allocation0]]
  $region42: #{tpu_custom_call.1} parent=0
    _
  %s8 = ssub.s32 1, %s6
  %s9 = scalar_select 0, %s8, %s6
  $region1: #{tpu_custom_call.1} parent=0
    #allocation2 [shape = 'u8[8192]{0}', space=vmem, size = 0x2000, scoped, tag = 'input window, operand 0, single buffered']
    #allocation3 [shape = 's32[1]{0}', space=sflag, size = 0x4, scoped, tag = 'scoped memory for tpu_custom_call.1']
    #allocation4 [shape = 's32[1]{0}', space=sflag, size = 0x4, scoped, tag = 'scoped memory for tpu_custom_call.1']
    #allocation5 [shape = 'u8[8192]{0}', space=vmem, size = 0x2000, scoped, tag = 'input window, operand 2, single buffered']
    #allocation6 [shape = 's32[1]{0}', space=sflag, size = 0x4, scoped, tag = 'scoped memory for tpu_custom_call.1']
    #allocation7 [shape = 'u8[16384]{0}', space=vmem, size = 0x4000, scoped, tag = 'input window, operand 4, single buffered']
    #allocation8 [shape = 'u8[8192]{0}', space=vmem, size = 0x2000, scoped, tag = 'output window, operand 0, single buffered']
    %10 = vsyncpa [#allocation3], 0
    %11 = vsyncpa [#allocation6], 0
    %12 = vsyncpa [#allocation4], 0
    // Predicated region
    $region2: #{tpu_custom_call.1} parent=1 // pred_check
      _
    $region3: #{tpu_custom_call.1} parent=1 // pred_check_branch
      %14 = sbr.rel (0) target = $region5
    $region4: #{tpu_custom_call.1} parent=1 // pred_region
      %s16 = ssub.s32 256, 256
      %17 = vsyncadd [#allocation3], %s16
      %s19 = sshll.u32 [#allocation2], 4
      %s20 = int_to_ptr.vmem [resolvable:$true] %s19
      %22 = dma.hbm_to_vmem [thread:$0]  %s0, 256, %s20, [#allocation3]
    $region5: #{tpu_custom_call.1} parent=1 // pred_fallthru
      _
    // Predicated region
    $region6: #{tpu_custom_call.1} parent=1 // pred_check
      _
    $region7: #{tpu_custom_call.1} parent=1 // pred_check_branch
      %24 = sbr.rel (0) target = $region9
    $region8: #{tpu_custom_call.1} parent=1 // pred_region
      _
    $region9: #{tpu_custom_call.1} parent=1 // pred_fallthru
      _
    // Predicated region
    $region10: #{tpu_custom_call.1} parent=1 // pred_check
      _
    $region11: #{tpu_custom_call.1} parent=1 // pred_check_branch
      %26 = sbr.rel (0) target = $region13
    $region12: #{tpu_custom_call.1} parent=1 // pred_region
      %s28 = ssub.s32 256, 256
      %29 = vsyncadd [#allocation6], %s28
      %s30 = sshll.u32 [#allocation5], 4
      %s31 = int_to_ptr.vmem [resolvable:$true] %s30
      %36 = dma.hbm_to_vmem [thread:$0]  %s2, 256, %s31, [#allocation6], 128, 128, 8
    $region13: #{tpu_custom_call.1} parent=1 // pred_fallthru
      _
    // Predicated region
    $region14: #{tpu_custom_call.1} parent=1 // pred_check
      _
    $region15: #{tpu_custom_call.1} parent=1 // pred_check_branch
      %38 = sbr.rel (0) target = $region17
    $region16: #{tpu_custom_call.1} parent=1 // pred_region
      _
    $region17: #{tpu_custom_call.1} parent=1 // pred_fallthru
      _
    // Predicated region
    $region18: #{tpu_custom_call.1} parent=1 // pred_check
      _
    $region19: #{tpu_custom_call.1} parent=1 // pred_check_branch
      %40 = sbr.rel (0) target = $region21
    $region20: #{tpu_custom_call.1} parent=1 // pred_region
      %s42 = ssub.s32 512, 512
      %43 = vsyncadd [#allocation6], %s42
      %s44 = sshll.u32 [#allocation7], 4
      %s45 = int_to_ptr.vmem [resolvable:$true] %s44
      %50 = dma.hbm_to_vmem [thread:$0]  %s4, 512, %s45, [#allocation6], 256, 256, 16
    $region21: #{tpu_custom_call.1} parent=1 // pred_fallthru
      _
    // Predicated region
    $region22: #{tpu_custom_call.1} parent=1 // pred_check
      _
    $region23: #{tpu_custom_call.1} parent=1 // pred_check_branch
      %52 = sbr.rel (0) target = $region25
    $region24: #{tpu_custom_call.1} parent=1 // pred_region
      %53 = dma.done [#allocation3], 256
    $region25: #{tpu_custom_call.1} parent=1 // pred_fallthru
      _
    // Predicated region
    $region26: #{tpu_custom_call.1} parent=1 // pred_check
      _
    $region27: #{tpu_custom_call.1} parent=1 // pred_check_branch
      %55 = sbr.rel (0) target = $region29
    $region28: #{tpu_custom_call.1} parent=1 // pred_region
      %56 = dma.done [#allocation6], 256
    $region29: #{tpu_custom_call.1} parent=1 // pred_fallthru
      _
    // Predicated region
    $region30: #{tpu_custom_call.1} parent=1 // pred_check
      _
    $region31: #{tpu_custom_call.1} parent=1 // pred_check_branch
      %58 = sbr.rel (0) target = $region33
    $region32: #{tpu_custom_call.1} parent=1 // pred_region
      %59 = dma.done [#allocation6], 512
    $region33: #{tpu_custom_call.1} parent=1 // pred_fallthru
      _
    %v60 = vld [vmem:[#allocation2] sm:$0xff]
    %v61 = vld [vmem:[#allocation2 + $0x8] sm:$0xff]
    %v62 = vmax.f32 %v60, 0.0
    %v63 = vmax.f32 %v61, 0.0
    %64 = vrot.lane.b32.xlu0 %v62, 17
    %v65 = vpop.permute.xlu0 %64
    %66 = vrot.lane.b32.xlu0 %v63, 17
    %v67 = vpop.permute.xlu0 %66
    %v68 = vlaneseq
    %v69 = vand.u32 %v68, 127
    %vm70 = vcmp.lt.s32.totalorder %v69, 17
    %v71 = vsel %vm70, %v65, %v67
    %v72 = vsel %vm70, %v67, %v65
    %v73 = vld [vmem:[#allocation7] ss:$8 sm:$0x3]
    %v75 = vlaneseq
    %v76 = vshrl.u32 %v75, 7
    %v77 = vsub.s32 0, %v76
    %v78 = vrot.slane %v73, %v77
    %v79 = vlaneseq
    %v80 = vshrl.u32 %v79, 7
    %v81 = vsub.s32 1, %v80
    %v82 = vrot.slane %v73, %v81
    %v85 = vmul.f32 %v72, %v78
    %v86 = vmul.f32 %v71, %v82
    %v87 = vld [vmem:[%s1] sm:$0xff]
    %89 = vset.pattern.permute.xlu0 0
    %90 = vperm.xlu0 %89, %v87
    %v91 = vpop.permute.xlu0 %90
    %v93 = vmul.f32 %v85, %v91
    %v94 = vmul.f32 %v86, %v91
    %95 = vrot.lane.b32.xlu0 %v62, 16
    %v96 = vpop.permute.xlu0 %95
    %97 = vrot.lane.b32.xlu0 %v63, 16
    %v98 = vpop.permute.xlu0 %97
    %vm99 = vcmp.lt.s32.totalorder %v69, 16
    %v100 = vsel %vm99, %v96, %v98
    %v101 = vsel %vm99, %v98, %v96
    %s102 = scalar_lea.vmem [#allocation7], 1
    %v103 = vld [vmem:[%s102] ss:$8 sm:$0x3]
    %v105 = vlaneseq
    %v106 = vshrl.u32 %v105, 7
    %v107 = vsub.s32 0, %v106
    %v108 = vrot.slane %v103, %v107
    %v109 = vlaneseq
    %v110 = vshrl.u32 %v109, 7
    %v111 = vsub.s32 1, %v110
    %v112 = vrot.slane %v103, %v111
    %v115 = vmul.f32 %v101, %v108
    %v116 = vmul.f32 %v100, %v112
    %117 = vset.pattern.permute.xlu0 1
    %118 = vperm.xlu0 %117, %v87
    %v119 = vpop.permute.xlu0 %118
    %v121 = vmul.f32 %v115, %v119
    %v122 = vmul.f32 %v116, %v119
    %v123 = vadd.f32 %v93, %v121
    %v124 = vadd.f32 %v94, %v122
    %125 = vrot.lane.b32.xlu0 %v62, 15
    %v126 = vpop.permute.xlu0 %125
    %127 = vrot.lane.b32.xlu0 %v63, 15
    %v128 = vpop.permute.xlu0 %127
    %vm129 = vcmp.lt.s32.totalorder %v69, 15
    %v130 = vsel %vm129, %v126, %v128
    %v131 = vsel %vm129, %v128, %v126
    %s132 = scalar_lea.vmem [#allocation7], 2
    %v133 = vld [vmem:[%s132] ss:$8 sm:$0x3]
    %v135 = vlaneseq
    %v136 = vshrl.u32 %v135, 7
    %v137 = vsub.s32 0, %v136
    %v138 = vrot.slane %v133, %v137
    %v139 = vlaneseq
    %v140 = vshrl.u32 %v139, 7
    %v141 = vsub.s32 1, %v140
    %v142 = vrot.slane %v133, %v141
    %v145 = vmul.f32 %v131, %v138
    %v146 = vmul.f32 %v130, %v142
    %147 = vset.pattern.permute.xlu0 2
    %148 = vperm.xlu0 %147, %v87
    %v149 = vpop.permute.xlu0 %148
    %v151 = vmul.f32 %v145, %v149
    %v152 = vmul.f32 %v146, %v149
    %v153 = vadd.f32 %v123, %v151
    %v154 = vadd.f32 %v124, %v152
    %155 = vrot.lane.b32.xlu0 %v62, 1
    %v156 = vpop.permute.xlu0 %155
    %157 = vrot.lane.b32.xlu0 %v63, 1
    %v158 = vpop.permute.xlu0 %157
    %vm159 = vcmp.lt.s32.totalorder %v69, 1
    %v160 = vsel %vm159, %v156, %v158
    %v161 = vsel %vm159, %v158, %v156
    %s162 = scalar_lea.vmem [#allocation7], 3
    %v163 = vld [vmem:[%s162] ss:$8 sm:$0x3]
    %v165 = vlaneseq
    %v166 = vshrl.u32 %v165, 7
    %v167 = vsub.s32 0, %v166
    %v168 = vrot.slane %v163, %v167
    %v169 = vlaneseq
    %v170 = vshrl.u32 %v169, 7
    %v171 = vsub.s32 1, %v170
    %v172 = vrot.slane %v163, %v171
    %v175 = vmul.f32 %v161, %v168
    %v176 = vmul.f32 %v160, %v172
    %177 = vset.pattern.permute.xlu0 3
    %178 = vperm.xlu0 %177, %v87
    %v179 = vpop.permute.xlu0 %178
    %v181 = vmul.f32 %v175, %v179
    %v182 = vmul.f32 %v176, %v179
    %v183 = vadd.f32 %v153, %v181
    %v184 = vadd.f32 %v154, %v182
    %185 = vset.pattern.permute.xlu0 4
    %186 = vperm.xlu0 %185, %v87
    %v187 = vpop.permute.xlu0 %186
    %v189 = vmul.f32 %v62, %v187
    %v190 = vmul.f32 %v63, %v187
    %v191 = vadd.f32 %v183, %v189
    %v192 = vadd.f32 %v184, %v190
    %193 = vrot.lane.b32.xlu0 %v62, 127
    %v194 = vpop.permute.xlu0 %193
    %195 = vrot.lane.b32.xlu0 %v63, 127
    %v196 = vpop.permute.xlu0 %195
    %vm197 = vcmp.lt.s32.totalorder %v69, 127
    %v198 = vsel %vm197, %v194, %v196
    %v199 = vsel %vm197, %v196, %v194
    %s200 = scalar_lea.vmem [#allocation7], 5
    %v201 = vld [vmem:[%s200] ss:$8 sm:$0x3]
    %v203 = vlaneseq
    %v204 = vshrl.u32 %v203, 7
    %v205 = vsub.s32 0, %v204
    %v206 = vrot.slane %v201, %v205
    %v207 = vlaneseq
    %v208 = vshrl.u32 %v207, 7
    %v209 = vsub.s32 1, %v208
    %v210 = vrot.slane %v201, %v209
    %v213 = vmul.f32 %v198, %v206
    %v214 = vmul.f32 %v199, %v210
    %215 = vset.pattern.permute.xlu0 5
    %216 = vperm.xlu0 %215, %v87
    %v217 = vpop.permute.xlu0 %216
    %v219 = vmul.f32 %v213, %v217
    %v220 = vmul.f32 %v214, %v217
    %v221 = vadd.f32 %v191, %v219
    %v222 = vadd.f32 %v192, %v220
    %223 = vrot.lane.b32.xlu0 %v62, 113
    %v224 = vpop.permute.xlu0 %223
    %225 = vrot.lane.b32.xlu0 %v63, 113
    %v226 = vpop.permute.xlu0 %225
    %vm227 = vcmp.lt.s32.totalorder %v69, 113
    %v228 = vsel %vm227, %v224, %v226
    %v229 = vsel %vm227, %v226, %v224
    %s230 = scalar_lea.vmem [#allocation7], 6
    %v231 = vld [vmem:[%s230] ss:$8 sm:$0x3]
    %v233 = vlaneseq
    %v234 = vshrl.u32 %v233, 7
    %v235 = vsub.s32 0, %v234
    %v236 = vrot.slane %v231, %v235
    %v237 = vlaneseq
    %v238 = vshrl.u32 %v237, 7
    %v239 = vsub.s32 1, %v238
    %v240 = vrot.slane %v231, %v239
    %v243 = vmul.f32 %v228, %v236
    %v244 = vmul.f32 %v229, %v240
    %245 = vset.pattern.permute.xlu0 6
    %246 = vperm.xlu0 %245, %v87
    %v247 = vpop.permute.xlu0 %246
    %v249 = vmul.f32 %v243, %v247
    %v250 = vmul.f32 %v244, %v247
    %v251 = vadd.f32 %v221, %v249
    %v252 = vadd.f32 %v222, %v250
    %253 = vrot.lane.b32.xlu0 %v62, 112
    %v254 = vpop.permute.xlu0 %253
    %255 = vrot.lane.b32.xlu0 %v63, 112
    %v256 = vpop.permute.xlu0 %255
    %vm257 = vcmp.lt.s32.totalorder %v69, 112
    %v258 = vsel %vm257, %v254, %v256
    %v259 = vsel %vm257, %v256, %v254
    %s260 = scalar_lea.vmem [#allocation7], 7
    %v261 = vld [vmem:[%s260] ss:$8 sm:$0x3]
    %v263 = vlaneseq
    %v264 = vshrl.u32 %v263, 7
    %v265 = vsub.s32 0, %v264
    %v266 = vrot.slane %v261, %v265
    %v267 = vlaneseq
    %v268 = vshrl.u32 %v267, 7
    %v269 = vsub.s32 1, %v268
    %v270 = vrot.slane %v261, %v269
    %v273 = vmul.f32 %v258, %v266
    %v274 = vmul.f32 %v259, %v270
    %275 = vset.pattern.permute.xlu0 7
    %276 = vperm.xlu0 %275, %v87
    %v277 = vpop.permute.xlu0 %276
    %v279 = vmul.f32 %v273, %v277
    %v280 = vmul.f32 %v274, %v277
    %v281 = vadd.f32 %v251, %v279
    %v282 = vadd.f32 %v252, %v280
    %283 = vrot.lane.b32.xlu0 %v62, 111
    %v284 = vpop.permute.xlu0 %283
    %285 = vrot.lane.b32.xlu0 %v63, 111
    %v286 = vpop.permute.xlu0 %285
    %vm287 = vcmp.lt.s32.totalorder %v69, 111
    %v288 = vsel %vm287, %v284, %v286
    %v289 = vsel %vm287, %v286, %v284
    %s290 = scalar_lea.vmem [#allocation7], 16
    %v291 = vld [vmem:[%s290] ss:$8 sm:$0x3]
    %v293 = vlaneseq
    %v294 = vshrl.u32 %v293, 7
    %v295 = vsub.s32 0, %v294
    %v296 = vrot.slane %v291, %v295
    %v297 = vlaneseq
    %v298 = vshrl.u32 %v297, 7
    %v299 = vsub.s32 1, %v298
    %v300 = vrot.slane %v291, %v299
    %v303 = vmul.f32 %v288, %v296
    %v304 = vmul.f32 %v289, %v300
    %305 = vset.pattern.permute.xlu0 8
    %306 = vperm.xlu0 %305, %v87
    %v307 = vpop.permute.xlu0 %306
    %v309 = vmul.f32 %v303, %v307
    %v310 = vmul.f32 %v304, %v307
    %v311 = vadd.f32 %v281, %v309
    %v312 = vadd.f32 %v282, %v310
    %v313 = vld [vmem:[#allocation5] sm:$0xff]
    %v314 = vld [vmem:[%s3] sm:$0xff]
    %316 = vset.pattern.permute.xlu0 0
    %317 = vperm.xlu0 %316, %v314
    %v318 = vpop.permute.xlu0 %317
    %vm320 = vcmask 64512
    %v322 = vsel %vm320, %v313, 0
    %324 = vmatprep.subr.mxu0 0.0
    %325 = vmatpush1.msra.mxu0 0.0
    %326 = vmatprep.subr.mxu0 0.0
    %327 = vmatpush1.msra.mxu0 0.0
    %328 = vmatprep.subr.mxu0 0.0
    %329 = vmatpush1.msra.mxu0 0.0
    %330 = vmatprep.subr.mxu0 0.0
    %331 = vmatpush1.msra.mxu0 0.0
    %332 = vmatprep.subr.mxu0 0.0
    %333 = vmatpush1.msra.mxu0 0.0
    %334 = vmatprep.subr.mxu0 0.0
    %335 = vmatpush1.msra.mxu0 0.0
    %336 = vmatprep.subr.mxu0 0.0
    %337 = vmatpush1.msra.mxu0 0.0
    %338 = vmatprep.subr.mxu0 0.0
    %339 = vmatpush1.msra.mxu0 0.0
    %340 = vmatprep.subr.mxu0 0.0
    %341 = vmatpush1.msra.mxu0 0.0
    %342 = vmatprep.subr.mxu0 0.0
    %343 = vmatpush1.msra.mxu0 0.0
    %344 = vmatprep.subr.mxu0 0.0
    %345 = vmatpush1.msra.mxu0 0.0
    %346 = vmatprep.subr.mxu0 0.0
    %347 = vmatpush1.msra.mxu0 0.0
    %348 = vmatprep.subr.mxu0 0.0
    %349 = vmatpush1.msra.mxu0 0.0
    %350 = vmatprep.subr.mxu0 0.0
    %351 = vmatpush1.msra.mxu0 0.0
    %352 = vmatprep.subr.mxu0 0.0
    %353 = vmatpush1.msra.mxu0 0.0
    %354 = vmatprep.subr.mxu0 %v312
    %355 = vmatpush1.msra.mxu0 %v311
    %356 = vmatprep.subr.mxu0 0.0
    %357 = vmatpush2.msra.mxu0 0.0
    %358 = vmatprep.subr.mxu0 0.0
    %359 = vmatpush2.msra.mxu0 0.0
    %360 = vmatprep.subr.mxu0 0.0
    %361 = vmatpush2.msra.mxu0 0.0
    %362 = vmatprep.subr.mxu0 0.0
    %363 = vmatpush2.msra.mxu0 0.0
    %364 = vmatprep.subr.mxu0 0.0
    %365 = vmatpush2.msra.mxu0 0.0
    %366 = vmatprep.subr.mxu0 0.0
    %367 = vmatpush2.msra.mxu0 0.0
    %368 = vmatprep.subr.mxu0 0.0
    %369 = vmatpush2.msra.mxu0 0.0
    %370 = vmatprep.subr.mxu0 0.0
    %371 = vmatpush2.msra.mxu0 0.0
    %372 = vmatprep.subr.mxu0 0.0
    %373 = vmatpush2.msra.mxu0 0.0
    %374 = vmatprep.subr.mxu0 0.0
    %375 = vmatpush2.msra.mxu0 0.0
    %376 = vmatprep.subr.mxu0 0.0
    %377 = vmatpush2.msra.mxu0 0.0
    %378 = vmatprep.subr.mxu0 0.0
    %379 = vmatpush2.msra.mxu0 0.0
    %380 = vmatprep.subr.mxu0 0.0
    %381 = vmatpush2.msra.mxu0 0.0
    %382 = vmatprep.subr.mxu0 0.0
    %383 = vmatpush2.msra.mxu0 0.0
    %384 = vmatprep.subr.mxu0 0.0
    %385 = vmatpush2.msra.mxu0 0.0
    %386 = vmatprep.subr.mxu0 0.0
    %387 = vmatpush2.msra.mxu0 0.0
    %388 = vmatprep.mubr.f32.mxu0 0.0
    %389 = vmatmul.mubr.f32.gmra.mxu0 %v322
    %v390 = vpop.f32.mrf.mxu0
    %v391 = vadd.f32 %v318, %v390
    %v392 = vpop.f32.mrf.mxu0
    %v393 = vadd.f32 %v318, %v392
    %394 = vdwg.mxu0
    %v395 = vmax.f32 %v391, 0.0
    %v396 = vmax.f32 %v393, 0.0
    %397 = vrot.lane.b32.xlu0 %v395, 17
    %v398 = vpop.permute.xlu0 %397
    %399 = vrot.lane.b32.xlu0 %v396, 17
    %v400 = vpop.permute.xlu0 %399
    %v401 = vsel %vm70, %v398, %v400
    %v402 = vsel %vm70, %v400, %v398
    %v403 = vmul.f32 %v402, %v78
    %v404 = vmul.f32 %v401, %v82
    %405 = vset.pattern.permute.xlu0 9
    %406 = vperm.xlu0 %405, %v87
    %v407 = vpop.permute.xlu0 %406
    %v409 = vmul.f32 %v403, %v407
    %v410 = vmul.f32 %v404, %v407
    %411 = vrot.lane.b32.xlu0 %v395, 16
    %v412 = vpop.permute.xlu0 %411
    %413 = vrot.lane.b32.xlu0 %v396, 16
    %v414 = vpop.permute.xlu0 %413
    %v415 = vsel %vm99, %v412, %v414
    %v416 = vsel %vm99, %v414, %v412
    %v417 = vmul.f32 %v416, %v108
    %v418 = vmul.f32 %v415, %v112
    %419 = vset.pattern.permute.xlu0 10
    %420 = vperm.xlu0 %419, %v87
    %v421 = vpop.permute.xlu0 %420
    %v423 = vmul.f32 %v417, %v421
    %v424 = vmul.f32 %v418, %v421
    %v425 = vadd.f32 %v409, %v423
    %v426 = vadd.f32 %v410, %v424
    %427 = vrot.lane.b32.xlu0 %v395, 15
    %v428 = vpop.permute.xlu0 %427
    %429 = vrot.lane.b32.xlu0 %v396, 15
    %v430 = vpop.permute.xlu0 %429
    %v431 = vsel %vm129, %v428, %v430
    %v432 = vsel %vm129, %v430, %v428
    %v433 = vmul.f32 %v432, %v138
    %v434 = vmul.f32 %v431, %v142
    %435 = vset.pattern.permute.xlu0 11
    %436 = vperm.xlu0 %435, %v87
    %v437 = vpop.permute.xlu0 %436
    %v439 = vmul.f32 %v433, %v437
    %v440 = vmul.f32 %v434, %v437
    %v441 = vadd.f32 %v425, %v439
    %v442 = vadd.f32 %v426, %v440
    %443 = vrot.lane.b32.xlu0 %v395, 1
    %v444 = vpop.permute.xlu0 %443
    %445 = vrot.lane.b32.xlu0 %v396, 1
    %v446 = vpop.permute.xlu0 %445
    %v447 = vsel %vm159, %v444, %v446
    %v448 = vsel %vm159, %v446, %v444
    %v449 = vmul.f32 %v448, %v168
    %v450 = vmul.f32 %v447, %v172
    %451 = vset.pattern.permute.xlu0 12
    %452 = vperm.xlu0 %451, %v87
    %v453 = vpop.permute.xlu0 %452
    %v455 = vmul.f32 %v449, %v453
    %v456 = vmul.f32 %v450, %v453
    %v457 = vadd.f32 %v441, %v455
    %v458 = vadd.f32 %v442, %v456
    %459 = vset.pattern.permute.xlu0 13
    %460 = vperm.xlu0 %459, %v87
    %v461 = vpop.permute.xlu0 %460
    %v463 = vmul.f32 %v395, %v461
    %v464 = vmul.f32 %v396, %v461
    %v465 = vadd.f32 %v457, %v463
    %v466 = vadd.f32 %v458, %v464
    %467 = vrot.lane.b32.xlu0 %v395, 127
    %v468 = vpop.permute.xlu0 %467
    %469 = vrot.lane.b32.xlu0 %v396, 127
    %v470 = vpop.permute.xlu0 %469
    %v471 = vsel %vm197, %v468, %v470
    %v472 = vsel %vm197, %v470, %v468
    %v473 = vmul.f32 %v471, %v206
    %v474 = vmul.f32 %v472, %v210
    %475 = vset.pattern.permute.xlu0 14
    %476 = vperm.xlu0 %475, %v87
    %v477 = vpop.permute.xlu0 %476
    %v479 = vmul.f32 %v473, %v477
    %v480 = vmul.f32 %v474, %v477
    %v481 = vadd.f32 %v465, %v479
    %v482 = vadd.f32 %v466, %v480
    %483 = vrot.lane.b32.xlu0 %v395, 113
    %v484 = vpop.permute.xlu0 %483
    %485 = vrot.lane.b32.xlu0 %v396, 113
    %v486 = vpop.permute.xlu0 %485
    %v487 = vsel %vm227, %v484, %v486
    %v488 = vsel %vm227, %v486, %v484
    %v489 = vmul.f32 %v487, %v236
    %v490 = vmul.f32 %v488, %v240
    %491 = vset.pattern.permute.xlu0 15
    %492 = vperm.xlu0 %491, %v87
    %v493 = vpop.permute.xlu0 %492
    %v495 = vmul.f32 %v489, %v493
    %v496 = vmul.f32 %v490, %v493
    %v497 = vadd.f32 %v481, %v495
    %v498 = vadd.f32 %v482, %v496
    %499 = vrot.lane.b32.xlu0 %v395, 112
    %v500 = vpop.permute.xlu0 %499
    %501 = vrot.lane.b32.xlu0 %v396, 112
    %v502 = vpop.permute.xlu0 %501
    %v503 = vsel %vm257, %v500, %v502
    %v504 = vsel %vm257, %v502, %v500
    %v505 = vmul.f32 %v503, %v266
    %v506 = vmul.f32 %v504, %v270
    %507 = vset.pattern.permute.xlu0 16
    %508 = vperm.xlu0 %507, %v87
    %v509 = vpop.permute.xlu0 %508
    %v511 = vmul.f32 %v505, %v509
    %v512 = vmul.f32 %v506, %v509
    %v513 = vadd.f32 %v497, %v511
    %v514 = vadd.f32 %v498, %v512
    %515 = vrot.lane.b32.xlu0 %v395, 111
    %v516 = vpop.permute.xlu0 %515
    %517 = vrot.lane.b32.xlu0 %v396, 111
    %v518 = vpop.permute.xlu0 %517
    %v519 = vsel %vm287, %v516, %v518
    %v520 = vsel %vm287, %v518, %v516
    %v521 = vmul.f32 %v519, %v296
    %v522 = vmul.f32 %v520, %v300
    %523 = vset.pattern.permute.xlu0 17
    %524 = vperm.xlu0 %523, %v87
    %v525 = vpop.permute.xlu0 %524
    %v527 = vmul.f32 %v521, %v525
    %v528 = vmul.f32 %v522, %v525
    %v529 = vadd.f32 %v513, %v527
    %v530 = vadd.f32 %v514, %v528
    %s531 = scalar_lea.vmem [#allocation5], 8
    %v532 = vld [vmem:[%s531] sm:$0xff]
    %533 = vset.pattern.permute.xlu0 1
    %534 = vperm.xlu0 %533, %v314
    %v535 = vpop.permute.xlu0 %534
    %v538 = vsel %vm320, %v532, 0
    %540 = vmatprep.subr.mxu0 0.0
    %541 = vmatpush1.msra.mxu0 0.0
    %542 = vmatprep.subr.mxu0 0.0
    %543 = vmatpush1.msra.mxu0 0.0
    %544 = vmatprep.subr.mxu0 0.0
    %545 = vmatpush1.msra.mxu0 0.0
    %546 = vmatprep.subr.mxu0 0.0
    %547 = vmatpush1.msra.mxu0 0.0
    %548 = vmatprep.subr.mxu0 0.0
    %549 = vmatpush1.msra.mxu0 0.0
    %550 = vmatprep.subr.mxu0 0.0
    %551 = vmatpush1.msra.mxu0 0.0
    %552 = vmatprep.subr.mxu0 0.0
    %553 = vmatpush1.msra.mxu0 0.0
    %554 = vmatprep.subr.mxu0 0.0
    %555 = vmatpush1.msra.mxu0 0.0
    %556 = vmatprep.subr.mxu0 0.0
    %557 = vmatpush1.msra.mxu0 0.0
    %558 = vmatprep.subr.mxu0 0.0
    %559 = vmatpush1.msra.mxu0 0.0
    %560 = vmatprep.subr.mxu0 0.0
    %561 = vmatpush1.msra.mxu0 0.0
    %562 = vmatprep.subr.mxu0 0.0
    %563 = vmatpush1.msra.mxu0 0.0
    %564 = vmatprep.subr.mxu0 0.0
    %565 = vmatpush1.msra.mxu0 0.0
    %566 = vmatprep.subr.mxu0 0.0
    %567 = vmatpush1.msra.mxu0 0.0
    %568 = vmatprep.subr.mxu0 0.0
    %569 = vmatpush1.msra.mxu0 0.0
    %570 = vmatprep.subr.mxu0 %v530
    %571 = vmatpush1.msra.mxu0 %v529
    %572 = vmatprep.subr.mxu0 0.0
    %573 = vmatpush2.msra.mxu0 0.0
    %574 = vmatprep.subr.mxu0 0.0
    %575 = vmatpush2.msra.mxu0 0.0
    %576 = vmatprep.subr.mxu0 0.0
    %577 = vmatpush2.msra.mxu0 0.0
    %578 = vmatprep.subr.mxu0 0.0
    %579 = vmatpush2.msra.mxu0 0.0
    %580 = vmatprep.subr.mxu0 0.0
    %581 = vmatpush2.msra.mxu0 0.0
    %582 = vmatprep.subr.mxu0 0.0
    %583 = vmatpush2.msra.mxu0 0.0
    %584 = vmatprep.subr.mxu0 0.0
    %585 = vmatpush2.msra.mxu0 0.0
    %586 = vmatprep.subr.mxu0 0.0
    %587 = vmatpush2.msra.mxu0 0.0
    %588 = vmatprep.subr.mxu0 0.0
    %589 = vmatpush2.msra.mxu0 0.0
    %590 = vmatprep.subr.mxu0 0.0
    %591 = vmatpush2.msra.mxu0 0.0
    %592 = vmatprep.subr.mxu0 0.0
    %593 = vmatpush2.msra.mxu0 0.0
    %594 = vmatprep.subr.mxu0 0.0
    %595 = vmatpush2.msra.mxu0 0.0
    %596 = vmatprep.subr.mxu0 0.0
    %597 = vmatpush2.msra.mxu0 0.0
    %598 = vmatprep.subr.mxu0 0.0
    %599 = vmatpush2.msra.mxu0 0.0
    %600 = vmatprep.subr.mxu0 0.0
    %601 = vmatpush2.msra.mxu0 0.0
    %602 = vmatprep.subr.mxu0 0.0
    %603 = vmatpush2.msra.mxu0 0.0
    %604 = vmatprep.mubr.f32.mxu0 0.0
    %605 = vmatmul.mubr.f32.gmra.mxu0 %v538
    %v606 = vpop.f32.mrf.mxu0
    %v607 = vadd.f32 %v535, %v606
    %v608 = vpop.f32.mrf.mxu0
    %v609 = vadd.f32 %v535, %v608
    %610 = vdwg.mxu0
    %611 = vst [vmem:[#allocation8] sm:$0xff] %v607
    %612 = vst [vmem:[#allocation8 + $0x8] sm:$0xff] %v609
    // Predicated region
    $region34: #{tpu_custom_call.1} parent=1 // pred_check
      _
    $region35: #{tpu_custom_call.1} parent=1 // pred_check_branch
      %614 = sbr.rel (0) target = $region37
    $region36: #{tpu_custom_call.1} parent=1 // pred_region
      %s616 = ssub.s32 256, 256
      %617 = vsyncadd [#allocation4], %s616
      %s619 = sshll.u32 [#allocation8], 4
      %s620 = int_to_ptr.vmem [resolvable:$true] %s619
      %622 = dma.vmem_to_hbm [thread:$0]  %s620, 256, %s5, [#allocation4]
    $region37: #{tpu_custom_call.1} parent=1 // pred_fallthru
      _
    // Predicated region
    $region38: #{tpu_custom_call.1} parent=1 // pred_check
      _
    $region39: #{tpu_custom_call.1} parent=1 // pred_check_branch
      %624 = sbr.rel (0) target = $region41
    $region40: #{tpu_custom_call.1} parent=1 // pred_region
      %625 = dma.done [#allocation4], 256
    $region41: #{tpu_custom_call.1} parent=1 // pred_fallthru
      _
    %626 = vsyncpa [#allocation3], 1
    %627 = vsyncpa [#allocation6], 1
    %628 = vsyncpa [#allocation4], 1

</llo_original>
